<compile_context>
chip_gen: v7x
topology: tpu7x:2x2x1
jax: 0.10.0
libtpu: 0.0.40
codegen_flags: <defaults>
</compile_context>

<pallas_src>
import jax
import jax.numpy as jnp
from jax.experimental import pallas as pl
from jax.experimental.pallas import tpu as pltpu


# ---------------------------------------------------------------------------
# Kernel bodies
# ---------------------------------------------------------------------------

def _make_spatial_kernel(F_g, F_l, F_int, use_vpu_mix):
    """Main kernel: channels on sublanes, spatial axis on the 128-lane axis."""

    def kernel(g_ref, x_ref, wg_ref, wx_ref, misc_ref, o_ref):
        # g_ref: (1, F_g, T), x_ref: (1, F_l, T)
        # wg_ref: (F_int, F_g), wx_ref: (F_int, F_l)    (input dtype)
        # misc_ref: (F_int, 3) f32 -- col0 = b_g+b_x, col1 = w_phi, [0,2] = b_phi
        g = g_ref[0]                                  # (F_g, T) native dtype
        x = x_ref[0]                                  # (F_l, T) native dtype

        misc = misc_ref[...]                          # (F_int, 3) f32
        bgx = misc[:, 0:1]                            # (F_int, 1)
        wphi = misc[:, 1:2]                           # (F_int, 1)
        bphi = misc[0:1, 2:3]                         # (1, 1)

        if use_vpu_mix:
            # Tiny channel mix: statically-unrolled VPU FMA chain in f32.
            gf = g.astype(jnp.float32)
            xf = x.astype(jnp.float32)
            wg = wg_ref[...].astype(jnp.float32)
            wx = wx_ref[...].astype(jnp.float32)
            g1x1 = bgx                                # broadcasts to (F_int, T)
            for k in range(F_g):
                g1x1 = g1x1 + wg[:, k:k + 1] * gf[k:k + 1, :]
            for k in range(F_l):
                g1x1 = g1x1 + wx[:, k:k + 1] * xf[k:k + 1, :]
        else:
            # MXU dots on native-dtype operands, f32 accumulation.
            g1x1 = (jnp.dot(wg_ref[...], g, preferred_element_type=jnp.float32)
                    + jnp.dot(wx_ref[...], x, preferred_element_type=jnp.float32)
                    + bgx)                            # (F_int, T)

        s = jnp.maximum(g1x1, 0.0)                    # ReLU
        # phi (F_int -> 1) as VPU multiply + sublane reduction (no tiny matmul).
        phi = jnp.sum(s * wphi, axis=0, keepdims=True) + bphi
        sig = jax.nn.sigmoid(phi)                     # (1, T) f32
        o_ref[0] = (x * sig.astype(x.dtype)).astype(o_ref.dtype)

    return kernel


def _rowwise_kernel(g_ref, x_ref, wgT_ref, wxT_ref, bgx_ref, wphi_ref, bphi_ref,
                    o_ref):
    """Fallback kernel: channels on lanes, rows = batch*spatial on sublanes."""
    g = g_ref[...]                                    # (tr, F_g)
    x = x_ref[...]                                    # (tr, F_l)
    s = (jnp.dot(g, wgT_ref[...], preferred_element_type=jnp.float32)
         + jnp.dot(x, wxT_ref[...], preferred_element_type=jnp.float32)
         + bgx_ref[...])                              # (tr, F_int) f32
    s = jnp.maximum(s, 0.0)
    phi = jnp.sum(s * wphi_ref[...], axis=-1, keepdims=True) + bphi_ref[...]
    sig = jax.nn.sigmoid(phi)                         # (tr, 1)
    o_ref[...] = (x * sig.astype(x.dtype)).astype(o_ref.dtype)


# ---------------------------------------------------------------------------
# Wrapper
# ---------------------------------------------------------------------------

def _vmem_capacity_bytes():
    try:
        info = pltpu.get_tpu_info()
        cap = getattr(info, "vmem_capacity_bytes", None)
        if cap:
            return int(cap)
    except Exception:
        pass
    return 64 * 1024 * 1024  # conservative fallback (v7x-sized per-core VMEM)


def _select_spatial_tile(HW, B, F_g, F_l, F_int, in_itemsize, out_itemsize,
                         vmem_cap, max_tile):
    # Live VMEM bytes per spatial lane per grid step:
    #   double-buffered g/x inputs + double-buffered output + f32 intermediates.
    per_lane = (2 * (F_g + F_l) * in_itemsize
                + 2 * F_l * out_itemsize
                + (2 * F_int + F_l + 4) * 4)
    budget = min(vmem_cap // 4, 24 * 1024 * 1024)
    tile = min(budget // per_lane, 32768)
    if max_tile is not None:
        tile = min(tile, max_tile)
    if tile >= HW:
        tile = HW                                    # full extent (no masking cost beyond one block)
    else:
        tile = max(128, (tile // 128) * 128)         # lane-aligned tile, ragged tail handled by Pallas
    # Megacore (v7x has 2 TensorCores): keep >= 2 grid steps when cheap to do so.
    if B * pl.cdiv(HW, tile) < 2 and HW >= 256:
        tile = ((pl.cdiv(HW, 2) + 127) // 128) * 128
    return tile


def _attention_block_rowwise(g, x, params, bgx, wphi_vec, bphi, vmem_limit):
    """Channels-on-lanes fallback for HW < 128 with wide channels."""
    B, F_g, H, W = g.shape
    _, F_l, _, _ = x.shape
    F_int = params["w_g"].shape[0]
    M = B * H * W

    g2 = jnp.transpose(g, (0, 2, 3, 1)).reshape(M, F_g)
    x2 = jnp.transpose(x, (0, 2, 3, 1)).reshape(M, F_l)
    wgT = params["w_g"].reshape(F_int, F_g).T.astype(g.dtype)
    wxT = params["w_x"].reshape(F_int, F_l).T.astype(x.dtype)
    bgx_row = bgx.reshape(1, F_int)
    wphi_row = wphi_vec.reshape(1, F_int)
    bphi_mat = bphi.reshape(1, 1)

    tr = M if M <= 2048 else 1024                    # rows per step (mult of 8 or full)
    grid = (pl.cdiv(M, tr),)

    out2 = pl.pallas_call(
        _rowwise_kernel,
        out_shape=jax.ShapeDtypeStruct((M, F_l), x.dtype),
        grid_spec=pltpu.PrefetchScalarGridSpec(
            num_scalar_prefetch=0,
            grid=grid,
            in_specs=[
                pl.BlockSpec((tr, F_g), lambda i: (i, 0)),
                pl.BlockSpec((tr, F_l), lambda i: (i, 0)),
                pl.BlockSpec((F_g, F_int), lambda i: (0, 0)),
                pl.BlockSpec((F_l, F_int), lambda i: (0, 0)),
                pl.BlockSpec((1, F_int), lambda i: (0, 0)),
                pl.BlockSpec((1, F_int), lambda i: (0, 0)),
                pl.BlockSpec((1, 1), lambda i: (0, 0)),
            ],
            out_specs=pl.BlockSpec((tr, F_l), lambda i: (i, 0)),
        ),
        compiler_params=pltpu.CompilerParams(
            dimension_semantics=("parallel",),
            vmem_limit_bytes=vmem_limit),
    )(g2, x2, wgT, wxT, bgx_row, wphi_row, bphi_mat)

    return jnp.transpose(out2.reshape(B, H, W, F_l), (0, 3, 1, 2))


def attention_block(g, x, params, *, max_tile=None):
    """g: (B, F_g, H, W), x: (B, F_l, H, W)  ->  (B, F_l, H, W)"""
    B, F_g, H, W = g.shape
    Bx, F_l, Hx, Wx = x.shape
    assert (B, H, W) == (Bx, Hx, Wx)
    F_int = params["w_g"].shape[0]
    HW = H * W

    vmem_cap = _vmem_capacity_bytes()
    vmem_limit = int(min(vmem_cap * 3 // 4, 96 * 1024 * 1024))

    # Tiny folded parameters, always in f32 for accuracy.
    bgx = params["b_g"].astype(jnp.float32) + params["b_x"].astype(jnp.float32)
    wphi_vec = params["w_phi"].reshape(F_int).astype(jnp.float32)
    bphi = params["b_phi"].astype(jnp.float32).reshape(())

    # Layout fallback: tiny spatial extent with wide channels -> channels on lanes.
    if HW < 128 and F_l >= 128:
        return _attention_block_rowwise(g, x, params, bgx, wphi_vec, bphi,
                                        vmem_limit)

    # ---- main path: channels on sublanes, spatial axis on lanes -------------
    g3 = g.reshape(B, F_g, HW)            # free layout change, no transpose
    x3 = x.reshape(B, F_l, HW)

    tile = _select_spatial_tile(HW, B, F_g, F_l, F_int,
                                g.dtype.itemsize, x.dtype.itemsize,
                                vmem_cap, max_tile)
    n_blk = pl.cdiv(HW, tile)             # ragged boundary: no pad, masked stores

    wg = params["w_g"].reshape(F_int, F_g).astype(g.dtype)
    wx = params["w_x"].reshape(F_int, F_l).astype(x.dtype)
    col2 = jnp.zeros((F_int,), jnp.float32).at[0].set(bphi)
    misc = jnp.stack([bgx, wphi_vec, col2], axis=1)        # (F_int, 3)

    use_vpu_mix = (F_g <= 16 and F_l <= 16 and F_int * (F_g + F_l) <= 256)
    kernel = _make_spatial_kernel(F_g, F_l, F_int, use_vpu_mix)

    tiled = lambda C: pl.BlockSpec((1, C, tile), lambda b, j: (b, 0, j))
    full = lambda shape: pl.BlockSpec(shape, lambda b, j: (0, 0))

    out3 = pl.pallas_call(
        kernel,
        out_shape=jax.ShapeDtypeStruct((B, F_l, HW), x.dtype),
        grid_spec=pltpu.PrefetchScalarGridSpec(
            num_scalar_prefetch=0,
            grid=(B, n_blk),
            in_specs=[
                tiled(F_g),                  # g tile   (1, F_g, tile)
                tiled(F_l),                  # x tile   (1, F_l, tile)
                full((F_int, F_g)),          # W_g
                full((F_int, F_l)),          # W_x
                full((F_int, 3)),            # packed [b_g+b_x | w_phi | b_phi]
            ],
            out_specs=tiled(F_l),
        ),
        compiler_params=pltpu.CompilerParams(
            dimension_semantics=("parallel", "parallel"),
            vmem_limit_bytes=vmem_limit),
    )(g3, x3, wg, wx, misc)

    return out3.reshape(B, F_l, H, W)


# ---------------------------------------------------------------------------
# Init + reference + tests
# ---------------------------------------------------------------------------

def init_params(key, F_g, F_l, F_int, dtype=jnp.float32):
    """Deterministic synthetic init (PyTorch Conv2d-style uniform fan-in bound)."""
    ks = jax.random.split(key, 6)

    def conv_init(kw, kb, out_c, in_c):
        bound = 1.0 / jnp.sqrt(in_c)
        w = jax.random.uniform(kw, (out_c, in_c, 1, 1), dtype, -bound, bound)
        b = jax.random.uniform(kb, (out_c,), dtype, -bound, bound)
        return w, b

    w_g, b_g = conv_init(ks[0], ks[1], F_int, F_g)
    w_x, b_x = conv_init(ks[2], ks[3], F_int, F_l)
    w_phi, b_phi = conv_init(ks[4], ks[5], 1, F_int)
    return {"w_g": w_g, "b_g": b_g,
            "w_x": w_x, "b_x": b_x,
            "w_phi": w_phi, "b_phi": b_phi}


def _reference(g, x, p):
    """Pure-JAX reference of the PyTorch forward (for sanity check)."""
    hi = jax.lax.Precision.HIGHEST

    def conv1x1(a, w, b):
        return (jnp.einsum("bchw,oc->bohw", a, w[:, :, 0, 0], precision=hi)
                + b[None, :, None, None])

    g1 = conv1x1(g, p["w_g"], p["b_g"])
    x1 = conv1x1(x, p["w_x"], p["b_x"])
    s = jax.nn.relu(g1 + x1)
    phi = conv1x1(s, p["w_phi"], p["b_phi"])
    return x * jax.nn.sigmoid(phi)


if __name__ == "__main__":
    key = jax.random.PRNGKey(0)

    # Test 1: tiny channels -> VPU channel-mix path, single full spatial tile.
    k_g, k_x, k_p = jax.random.split(key, 3)
    B, F_g, F_l, F_int, H, W = 2, 4, 4, 8, 16, 16
    g = jax.random.normal(k_g, (B, F_g, H, W), jnp.float32)
    x = jax.random.normal(k_x, (B, F_l, H, W), jnp.float32)
    params = init_params(k_p, F_g, F_l, F_int)

    out = jax.block_until_ready(attention_block(g, x, params))
    ref = _reference(g, x, params)
    assert out.shape == (B, F_l, H, W)
    assert jnp.allclose(out, ref, atol=1e-5, rtol=1e-5), "mismatch (test 1)"

    # Test 2: larger channels -> MXU path; run both the single-full-tile path
    # (default) and the ragged cdiv-grid path (max_tile=128, HW=400 not a
    # multiple of 128).
    k_g2, k_x2, k_p2 = jax.random.split(jax.random.PRNGKey(1), 3)
    B2, F_g2, F_l2, F_int2, H2, W2 = 2, 32, 32, 32, 20, 20
    g2 = jax.random.normal(k_g2, (B2, F_g2, H2, W2), jnp.float32)
    x2 = jax.random.normal(k_x2, (B2, F_l2, H2, W2), jnp.float32)
    params2 = init_params(k_p2, F_g2, F_l2, F_int2)
    ref2 = _reference(g2, x2, params2)

    out2a = jax.block_until_ready(attention_block(g2, x2, params2))
    assert out2a.shape == (B2, F_l2, H2, W2)
    assert jnp.allclose(out2a, ref2, atol=1e-4, rtol=1e-4), "mismatch (test 2a)"

    out2b = jax.block_until_ready(attention_block(g2, x2, params2, max_tile=128))
    assert jnp.allclose(out2b, ref2, atol=1e-4, rtol=1e-4), "mismatch (test 2b)"

    # Test 3: deep-UNet shape (tiny spatial, wide channels) -> rowwise fallback.
    k_g3, k_x3, k_p3 = jax.random.split(jax.random.PRNGKey(2), 3)
    B3, F_g3, F_l3, F_int3, H3, W3 = 1, 64, 128, 64, 8, 8
    g3 = jax.random.normal(k_g3, (B3, F_g3, H3, W3), jnp.float32)
    x3 = jax.random.normal(k_x3, (B3, F_l3, H3, W3), jnp.float32)
    params3 = init_params(k_p3, F_g3, F_l3, F_int3)

    out3 = jax.block_until_ready(attention_block(g3, x3, params3))
    ref3 = _reference(g3, x3, params3)
    assert out3.shape == (B3, F_l3, H3, W3)
    assert jnp.allclose(out3, ref3, atol=1e-4, rtol=1e-4), "mismatch (test 3)"

    print("KERNEL_OK")
</pallas_src>

<mosaic_0001>
module attributes {stable_mosaic.version = 11 : i64} {
  func.func @kernel(%arg0: i32, %arg1: i32, %arg2: memref<1x4x256xf32, #tpu.memory_space<vmem>>, %arg3: memref<1x4x256xf32, #tpu.memory_space<vmem>>, %arg4: memref<8x4xf32, #tpu.memory_space<vmem>>, %arg5: memref<8x4xf32, #tpu.memory_space<vmem>>, %arg6: memref<8x3xf32, #tpu.memory_space<vmem>>, %arg7: memref<1x4x256xf32, #tpu.memory_space<vmem>>) attributes {dimension_semantics = [#tpu.dimension_semantics<parallel>, #tpu.dimension_semantics<parallel>], iteration_bounds = array<i64: 2, 1>, scalar_prefetch = 0 : i64, scratch_operands = 0 : i64, tpu.core_type = #tpu.core_type<tc>, window_params = [{transform_indices = @transform_0, window_bounds = array<i64: 1, 4, 256>}, {transform_indices = @transform_1, window_bounds = array<i64: 1, 4, 256>}, {pipeline_mode = #tpu.pipeline_mode<synchronous>, transform_indices = @transform_2, window_bounds = array<i64: 8, 4>}, {pipeline_mode = #tpu.pipeline_mode<synchronous>, transform_indices = @transform_3, window_bounds = array<i64: 8, 4>}, {pipeline_mode = #tpu.pipeline_mode<synchronous>, transform_indices = @transform_4, window_bounds = array<i64: 8, 3>}, {transform_indices = @transform_5, window_bounds = array<i64: 1, 4, 256>}]} {
    %c0 = arith.constant 0 : index
    %c0_0 = arith.constant 0 : index
    %c0_1 = arith.constant 0 : index
    %0 = vector.load %arg2[%c0, %c0_0, %c0_1] : memref<1x4x256xf32, #tpu.memory_space<vmem>>, vector<1x4x256xf32>
    %1 = vector.shape_cast %0 : vector<1x4x256xf32> to vector<4x256xf32>
    %c0_2 = arith.constant 0 : index
    %c0_3 = arith.constant 0 : index
    %c0_4 = arith.constant 0 : index
    %2 = vector.load %arg3[%c0_2, %c0_3, %c0_4] : memref<1x4x256xf32, #tpu.memory_space<vmem>>, vector<1x4x256xf32>
    %3 = vector.shape_cast %2 : vector<1x4x256xf32> to vector<4x256xf32>
    %c0_5 = arith.constant 0 : index
    %c0_6 = arith.constant 0 : index
    %4 = vector.load %arg6[%c0_5, %c0_6] : memref<8x3xf32, #tpu.memory_space<vmem>>, vector<8x3xf32>
    %5 = vector.extract_strided_slice %4 {offsets = [0, 0], sizes = [8, 1], strides = [1, 1]} : vector<8x3xf32> to vector<8x1xf32>
    %6 = vector.extract_strided_slice %4 {offsets = [0, 1], sizes = [8, 1], strides = [1, 1]} : vector<8x3xf32> to vector<8x1xf32>
    %7 = vector.extract_strided_slice %4 {offsets = [0, 2], sizes = [1, 1], strides = [1, 1]} : vector<8x3xf32> to vector<1x1xf32>
    %c0_7 = arith.constant 0 : index
    %c0_8 = arith.constant 0 : index
    %8 = vector.load %arg4[%c0_7, %c0_8] : memref<8x4xf32, #tpu.memory_space<vmem>>, vector<8x4xf32>
    %c0_9 = arith.constant 0 : index
    %c0_10 = arith.constant 0 : index
    %9 = vector.load %arg5[%c0_9, %c0_10] : memref<8x4xf32, #tpu.memory_space<vmem>>, vector<8x4xf32>
    %10 = vector.extract_strided_slice %8 {offsets = [0, 0], sizes = [8, 1], strides = [1, 1]} : vector<8x4xf32> to vector<8x1xf32>
    %11 = vector.extract_strided_slice %1 {offsets = [0, 0], sizes = [1, 256], strides = [1, 1]} : vector<4x256xf32> to vector<1x256xf32>
    %12 = vector.broadcast %10 : vector<8x1xf32> to vector<8x256xf32>
    %13 = vector.broadcast %11 : vector<1x256xf32> to vector<8x256xf32>
    %14 = arith.mulf %12, %13 : vector<8x256xf32>
    %15 = vector.broadcast %5 : vector<8x1xf32> to vector<8x256xf32>
    %16 = arith.addf %15, %14 : vector<8x256xf32>
    %17 = vector.extract_strided_slice %8 {offsets = [0, 1], sizes = [8, 1], strides = [1, 1]} : vector<8x4xf32> to vector<8x1xf32>
    %18 = vector.extract_strided_slice %1 {offsets = [1, 0], sizes = [1, 256], strides = [1, 1]} : vector<4x256xf32> to vector<1x256xf32>
    %19 = vector.broadcast %17 : vector<8x1xf32> to vector<8x256xf32>
    %20 = vector.broadcast %18 : vector<1x256xf32> to vector<8x256xf32>
    %21 = arith.mulf %19, %20 : vector<8x256xf32>
    %22 = arith.addf %16, %21 : vector<8x256xf32>
    %23 = vector.extract_strided_slice %8 {offsets = [0, 2], sizes = [8, 1], strides = [1, 1]} : vector<8x4xf32> to vector<8x1xf32>
    %24 = vector.extract_strided_slice %1 {offsets = [2, 0], sizes = [1, 256], strides = [1, 1]} : vector<4x256xf32> to vector<1x256xf32>
    %25 = vector.broadcast %23 : vector<8x1xf32> to vector<8x256xf32>
    %26 = vector.broadcast %24 : vector<1x256xf32> to vector<8x256xf32>
    %27 = arith.mulf %25, %26 : vector<8x256xf32>
    %28 = arith.addf %22, %27 : vector<8x256xf32>
    %29 = vector.extract_strided_slice %8 {offsets = [0, 3], sizes = [8, 1], strides = [1, 1]} : vector<8x4xf32> to vector<8x1xf32>
    %30 = vector.extract_strided_slice %1 {offsets = [3, 0], sizes = [1, 256], strides = [1, 1]} : vector<4x256xf32> to vector<1x256xf32>
    %31 = vector.broadcast %29 : vector<8x1xf32> to vector<8x256xf32>
    %32 = vector.broadcast %30 : vector<1x256xf32> to vector<8x256xf32>
    %33 = arith.mulf %31, %32 : vector<8x256xf32>
    %34 = arith.addf %28, %33 : vector<8x256xf32>
    %35 = vector.extract_strided_slice %9 {offsets = [0, 0], sizes = [8, 1], strides = [1, 1]} : vector<8x4xf32> to vector<8x1xf32>
    %36 = vector.extract_strided_slice %3 {offsets = [0, 0], sizes = [1, 256], strides = [1, 1]} : vector<4x256xf32> to vector<1x256xf32>
    %37 = vector.broadcast %35 : vector<8x1xf32> to vector<8x256xf32>
    %38 = vector.broadcast %36 : vector<1x256xf32> to vector<8x256xf32>
    %39 = arith.mulf %37, %38 : vector<8x256xf32>
    %40 = arith.addf %34, %39 : vector<8x256xf32>
    %41 = vector.extract_strided_slice %9 {offsets = [0, 1], sizes = [8, 1], strides = [1, 1]} : vector<8x4xf32> to vector<8x1xf32>
    %42 = vector.extract_strided_slice %3 {offsets = [1, 0], sizes = [1, 256], strides = [1, 1]} : vector<4x256xf32> to vector<1x256xf32>
    %43 = vector.broadcast %41 : vector<8x1xf32> to vector<8x256xf32>
    %44 = vector.broadcast %42 : vector<1x256xf32> to vector<8x256xf32>
    %45 = arith.mulf %43, %44 : vector<8x256xf32>
    %46 = arith.addf %40, %45 : vector<8x256xf32>
    %47 = vector.extract_strided_slice %9 {offsets = [0, 2], sizes = [8, 1], strides = [1, 1]} : vector<8x4xf32> to vector<8x1xf32>
    %48 = vector.extract_strided_slice %3 {offsets = [2, 0], sizes = [1, 256], strides = [1, 1]} : vector<4x256xf32> to vector<1x256xf32>
    %49 = vector.broadcast %47 : vector<8x1xf32> to vector<8x256xf32>
    %50 = vector.broadcast %48 : vector<1x256xf32> to vector<8x256xf32>
    %51 = arith.mulf %49, %50 : vector<8x256xf32>
    %52 = arith.addf %46, %51 : vector<8x256xf32>
    %53 = vector.extract_strided_slice %9 {offsets = [0, 3], sizes = [8, 1], strides = [1, 1]} : vector<8x4xf32> to vector<8x1xf32>
    %54 = vector.extract_strided_slice %3 {offsets = [3, 0], sizes = [1, 256], strides = [1, 1]} : vector<4x256xf32> to vector<1x256xf32>
    %55 = vector.broadcast %53 : vector<8x1xf32> to vector<8x256xf32>
    %56 = vector.broadcast %54 : vector<1x256xf32> to vector<8x256xf32>
    %57 = arith.mulf %55, %56 : vector<8x256xf32>
    %58 = arith.addf %52, %57 : vector<8x256xf32>
    %cst = arith.constant 0.000000e+00 : f32
    %59 = vector.broadcast %cst : f32 to vector<8x256xf32>
    %60 = arith.maximumf %58, %59 : vector<8x256xf32>
    %61 = vector.broadcast %6 : vector<8x1xf32> to vector<8x256xf32>
    %62 = arith.mulf %60, %61 : vector<8x256xf32>
    %cst_11 = arith.constant dense<0.000000e+00> : vector<256xf32>
    %63 = vector.multi_reduction <add>, %62, %cst_11 [0] : vector<8x256xf32> to vector<256xf32>
    %64 = vector.shape_cast %63 : vector<256xf32> to vector<1x256xf32>
    %65 = vector.broadcast %7 : vector<1x1xf32> to vector<1x256xf32>
    %66 = arith.addf %64, %65 : vector<1x256xf32>
    %67 = arith.negf %66 : vector<1x256xf32>
    %68 = math.exp %67 : vector<1x256xf32>
    %cst_12 = arith.constant 1.000000e+00 : f32
    %69 = vector.broadcast %cst_12 : f32 to vector<1x256xf32>
    %70 = arith.addf %69, %68 : vector<1x256xf32>
    %71 = arith.divf %69, %70 : vector<1x256xf32>
    %72 = vector.broadcast %71 : vector<1x256xf32> to vector<4x256xf32>
    %73 = arith.mulf %3, %72 : vector<4x256xf32>
    %c0_13 = arith.constant 0 : index
    %c0_14 = arith.constant 0 : index
    %c0_15 = arith.constant 0 : index
    %74 = vector.load %arg7[%c0_13, %c0_14, %c0_15] : memref<1x4x256xf32, #tpu.memory_space<vmem>>, vector<1x4x256xf32>
    %75 = vector.shape_cast %74 : vector<1x4x256xf32> to vector<4x256xf32>
    %76 = vector.shape_cast %73 : vector<4x256xf32> to vector<1x4x256xf32>
    tpu.vector_store %arg7[%c0_13, %c0_14, %c0_15], %76 {strides = array<i32>} : memref<1x4x256xf32, #tpu.memory_space<vmem>>, vector<1x4x256xf32>,
    return
  }
  func.func @transform_0(%arg0: i32, %arg1: i32) -> (i32, i32, i32) {
    %c0_i32 = arith.constant 0 : i32
    %c0_i32_0 = arith.constant 0 : i32
    return %arg0, %c0_i32, %arg1 : i32, i32, i32
  }
  func.func @transform_1(%arg0: i32, %arg1: i32) -> (i32, i32, i32) {
    %c0_i32 = arith.constant 0 : i32
    %c0_i32_0 = arith.constant 0 : i32
    return %arg0, %c0_i32, %arg1 : i32, i32, i32
  }
  func.func @transform_2(%arg0: i32, %arg1: i32) -> (i32, i32) {
    %c0_i32 = arith.constant 0 : i32
    %c0_i32_0 = arith.constant 0 : i32
    %c0_i32_1 = arith.constant 0 : i32
    return %c0_i32, %c0_i32_0 : i32, i32
  }
  func.func @transform_3(%arg0: i32, %arg1: i32) -> (i32, i32) {
    %c0_i32 = arith.constant 0 : i32
    %c0_i32_0 = arith.constant 0 : i32
    %c0_i32_1 = arith.constant 0 : i32
    return %c0_i32, %c0_i32_0 : i32, i32
  }
  func.func @transform_4(%arg0: i32, %arg1: i32) -> (i32, i32) {
    %c0_i32 = arith.constant 0 : i32
    %c0_i32_0 = arith.constant 0 : i32
    %c0_i32_1 = arith.constant 0 : i32
    return %c0_i32, %c0_i32_0 : i32, i32
  }
  func.func @transform_5(%arg0: i32, %arg1: i32) -> (i32, i32, i32) {
    %c0_i32 = arith.constant 0 : i32
    %c0_i32_0 = arith.constant 0 : i32
    return %arg0, %c0_i32, %arg1 : i32, i32, i32
  }
}

</mosaic_0001>

<llo_original>
// kernel: tpu_custom_call.1
$region0: #{tpu_custom_call.1}
  #allocation0 [shape = 'u32[]', space=smem, size = 0x4, offset = 0x4, fixed_abs, tag = 'smem constant byte address 0x4 - core index']
  #allocation1 [shape = 'u32[144,128]{1,0:T(1,128)}', space=vmem, size = 0x12000, scoped, tag = 'internal scratch']
  %s0 = inlined_call_operand.vmem [shape: f32[2,4,256], index: 0, kind: input, shape index: {}]
  %s1 = inlined_call_operand.vmem [shape: f32[2,4,256], index: 1, kind: input, shape index: {}]
  %s2 = inlined_call_operand.vmem [shape: f32[8,4], index: 2, kind: input, shape index: {}]
  %s3 = inlined_call_operand.vmem [shape: f32[8,4], index: 3, kind: input, shape index: {}]
  %s4 = inlined_call_operand.vmem [shape: f32[8,3], index: 4, kind: input, shape index: {}]
  %s5 = inlined_call_operand.hbm [shape: f32[2,4,256], index: 5, kind: output, shape index: {}]
  %s6 = sld [smem:[#allocation0]]
  $region53: #{tpu_custom_call.1} parent=0
    _
  %s8 = ssub.s32 1, %s6
  %s9 = scalar_select 0, %s8, %s6
  $region1: #{tpu_custom_call.1} parent=0
    #allocation2 [shape = 'u8[8192]{0}', space=vmem, size = 0x2000, scoped, tag = 'output window, operand 0']
    #allocation3 [shape = 's32[2]{0}', space=sflag, size = 0x8, scoped, tag = 'scoped memory for tpu_custom_call.1']
    %10 = vsyncpa [#allocation3], 0
    %s11 = scalar_lea.sflag [#allocation3], 1
    %12 = vsyncpa %s11, 0
    loop: start=0, step=1, limit=4
    $region2: #{tpu_custom_call.1} parent=1 // loop_pre_header
      _
    $region3: #{tpu_custom_call.1} parent=1 // loop_header
      %s14 = sphi 0, %s18
      %p15 = scmp.ge.s32.totalorder %s14, 4
      %s21 = sphi 0, %s33
      %s22 = sphi 0, %s29
      %s23 = sphi 0, %s21
      %s24 = sphi 0, %s22
      %s25 = sphi 0, %s23
      %s26 = sphi 0, %s24
      %s38 = sphi 0, %s40
      %s41 = sphi 0, %s38
      %s42 = sphi 0, %s41
      %s58 = sphi 0, %s42
      %s66 = sphi 0, %s68
      %s69 = sphi 0, %s66
      %s70 = sphi 0, %s69
      %s86 = sphi 0, %s70
      %s90 = sphi 0, %s90
      %s92 = sphi 0, %s90
      %s93 = sphi 0, %s92
      %s107 = sphi 0, %s93
      %s111 = sphi 0, %s111
      %s113 = sphi 0, %s111
      %s114 = sphi 0, %s113
      %s128 = sphi 0, %s114
      %s132 = sphi 0, %s132
      %s134 = sphi 0, %s132
      %s135 = sphi 0, %s134
      %s149 = sphi 0, %s135
      %s157 = sphi 0, %s159
      %s160 = sphi 0, %s157
      %s161 = sphi 0, %s160
      %s177 = sphi 0, %s161
    $region4: #{tpu_custom_call.1} parent=1 // loop_header_branch
      %17 = sbr.rel (%p15) target = $region8
    $region5: #{tpu_custom_call.1} parent=1 // loop_body
      %s19 = ssub.s32 %s14, 1
      %s20 = ssub.s32 %s14, 2
      %s27 = sadd.s32 1, %s22
      %p28 = scmp.ge.s32.totalorder %s27, 1
      %s29 = scalar_select %p28, 0, %s27
      %s30 = sadd.s32 1, %s21
      %s31 = scalar_select %p28, %s30, %s21
      %p32 = scmp.ge.s32.totalorder %s31, 2
      %s33 = scalar_select %p32, 0, %s31
      %s34 = ssub.s32 %s21, %s33
      %s35 = ssub.s32 %s22, %s29
      %s36 = sor.u32 %s34, %s35
      %p37 = scmp.eq.s32.totalorder %s36, 0
      %s39 = sadd.s32 %s38, 1
      %s40 = scalar_select %p37, %s38, %s39
      %p43 = pneg %p37
      %p44 = scmp.eq.s32.totalorder %s14, 1
      %p45 = por %p43, %p44
      %p46 = scmp.ne.s32.totalorder %s38, %s41
      %p47 = scmp.eq.s32.totalorder %s14, 0
      %p48 = por %p46, %p47
      %p49 = scmp.ne.s32.totalorder %s38, %s41
      %p50 = scmp.eq.s32.totalorder %s19, 1
      %p51 = por %p49, %p50
      %p52 = scmp.ne.s32.totalorder %s41, %s42
      %p53 = scmp.eq.s32.totalorder %s19, 0
      %p54 = por %p52, %p53
      %p55 = scmp.ne.s32.totalorder %s41, %s42
      %p56 = scmp.eq.s32.totalorder %s20, 1
      %p57 = por %p55, %p56
      %p59 = scmp.ne.s32.totalorder %s42, %s58
      %p60 = scmp.eq.s32.totalorder %s20, 0
      %p61 = por %p59, %p60
      %s62 = ssub.s32 %s21, %s33
      %s63 = ssub.s32 %s22, %s29
      %s64 = sor.u32 %s62, %s63
      %p65 = scmp.eq.s32.totalorder %s64, 0
      %s67 = sadd.s32 %s66, 1
      %s68 = scalar_select %p65, %s66, %s67
      %p71 = pneg %p65
      %p72 = scmp.eq.s32.totalorder %s14, 1
      %p73 = por %p71, %p72
      %p74 = scmp.ne.s32.totalorder %s66, %s69
      %p75 = scmp.eq.s32.totalorder %s14, 0
      %p76 = por %p74, %p75
      %p77 = scmp.ne.s32.totalorder %s66, %s69
      %p78 = scmp.eq.s32.totalorder %s19, 1
      %p79 = por %p77, %p78
      %p80 = scmp.ne.s32.totalorder %s69, %s70
      %p81 = scmp.eq.s32.totalorder %s19, 0
      %p82 = por %p80, %p81
      %p83 = scmp.ne.s32.totalorder %s69, %s70
      %p84 = scmp.eq.s32.totalorder %s20, 1
      %p85 = por %p83, %p84
      %p87 = scmp.ne.s32.totalorder %s70, %s86
      %p88 = scmp.eq.s32.totalorder %s20, 0
      %p89 = por %p87, %p88
      %s91 = sadd.s32 %s90, 1
      %p94 = scmp.eq.s32.totalorder %s14, 1
      %p95 = scmp.ne.s32.totalorder %s90, %s92
      %p96 = scmp.eq.s32.totalorder %s14, 0
      %p97 = por %p95, %p96
      %p98 = scmp.ne.s32.totalorder %s90, %s92
      %p99 = scmp.eq.s32.totalorder %s19, 1
      %p100 = por %p98, %p99
      %p101 = scmp.ne.s32.totalorder %s92, %s93
      %p102 = scmp.eq.s32.totalorder %s19, 0
      %p103 = por %p101, %p102
      %p104 = scmp.ne.s32.totalorder %s92, %s93
      %p105 = scmp.eq.s32.totalorder %s20, 1
      %p106 = por %p104, %p105
      %p108 = scmp.ne.s32.totalorder %s93, %s107
      %p109 = scmp.eq.s32.totalorder %s20, 0
      %p110 = por %p108, %p109
      %s112 = sadd.s32 %s111, 1
      %p115 = scmp.eq.s32.totalorder %s14, 1
      %p116 = scmp.ne.s32.totalorder %s111, %s113
      %p117 = scmp.eq.s32.totalorder %s14, 0
      %p118 = por %p116, %p117
      %p119 = scmp.ne.s32.totalorder %s111, %s113
      %p120 = scmp.eq.s32.totalorder %s19, 1
      %p121 = por %p119, %p120
      %p122 = scmp.ne.s32.totalorder %s113, %s114
      %p123 = scmp.eq.s32.totalorder %s19, 0
      %p124 = por %p122, %p123
      %p125 = scmp.ne.s32.totalorder %s113, %s114
      %p126 = scmp.eq.s32.totalorder %s20, 1
      %p127 = por %p125, %p126
      %p129 = scmp.ne.s32.totalorder %s114, %s128
      %p130 = scmp.eq.s32.totalorder %s20, 0
      %p131 = por %p129, %p130
      %s133 = sadd.s32 %s132, 1
      %p136 = scmp.eq.s32.totalorder %s14, 1
      %p137 = scmp.ne.s32.totalorder %s132, %s134
      %p138 = scmp.eq.s32.totalorder %s14, 0
      %p139 = por %p137, %p138
      %p140 = scmp.ne.s32.totalorder %s132, %s134
      %p141 = scmp.eq.s32.totalorder %s19, 1
      %p142 = por %p140, %p141
      %p143 = scmp.ne.s32.totalorder %s134, %s135
      %p144 = scmp.eq.s32.totalorder %s19, 0
      %p145 = por %p143, %p144
      %p146 = scmp.ne.s32.totalorder %s134, %s135
      %p147 = scmp.eq.s32.totalorder %s20, 1
      %p148 = por %p146, %p147
      %p150 = scmp.ne.s32.totalorder %s135, %s149
      %p151 = scmp.eq.s32.totalorder %s20, 0
      %p152 = por %p150, %p151
      %s153 = ssub.s32 %s21, %s33
      %s154 = ssub.s32 %s22, %s29
      %s155 = sor.u32 %s153, %s154
      %p156 = scmp.eq.s32.totalorder %s155, 0
      %s158 = sadd.s32 %s157, 1
      %s159 = scalar_select %p156, %s157, %s158
      %p162 = pneg %p156
      %p163 = scmp.eq.s32.totalorder %s14, 1
      %p164 = por %p162, %p163
      %p165 = scmp.ne.s32.totalorder %s157, %s160
      %p166 = scmp.eq.s32.totalorder %s14, 0
      %p167 = por %p165, %p166
      %p168 = scmp.ne.s32.totalorder %s157, %s160
      %p169 = scmp.eq.s32.totalorder %s19, 1
      %p170 = por %p168, %p169
      %p171 = scmp.ne.s32.totalorder %s160, %s161
      %p172 = scmp.eq.s32.totalorder %s19, 0
      %p173 = por %p171, %p172
      %p174 = scmp.ne.s32.totalorder %s160, %s161
      %p175 = scmp.eq.s32.totalorder %s20, 1
      %p176 = por %p174, %p175
      %p178 = scmp.ne.s32.totalorder %s161, %s177
      %p179 = scmp.eq.s32.totalorder %s20, 0
      %p180 = por %p178, %p179
      %p181 = scmp.le.s32.totalorder 1, %s14
      %p182 = scmp.lt.s32.totalorder %s14, 3
      %p183 = pnand %p181, %p182
      %p184 = pneg %p183
      // Predicated region
      $region9: #{tpu_custom_call.1} parent=5 // pred_check
        _
      $region10: #{tpu_custom_call.1} parent=5 // pred_check_branch
        %186 = sbr.rel (%p183) target = $region12
      $region11: #{tpu_custom_call.1} parent=5 // pred_region
        %s187 = ssub.s32 %s14, 1
        // Predicated region
        $region13: #{tpu_custom_call.1} parent=11 // pred_check
          %p188 = pneg %p103
        $region14: #{tpu_custom_call.1} parent=11 // pred_check_branch
          %190 = sbr.rel (%p188) target = $region16
        $region15: #{tpu_custom_call.1} parent=11 // pred_region
          _
        $region16: #{tpu_custom_call.1} parent=11 // pred_fallthru
          _
        // Predicated region
        $region17: #{tpu_custom_call.1} parent=11 // pred_check
          %p191 = pneg %p124
        $region18: #{tpu_custom_call.1} parent=11 // pred_check_branch
          %193 = sbr.rel (%p191) target = $region20
        $region19: #{tpu_custom_call.1} parent=11 // pred_region
          _
        $region20: #{tpu_custom_call.1} parent=11 // pred_fallthru
          _
        // Predicated region
        $region21: #{tpu_custom_call.1} parent=11 // pred_check
          %p194 = pneg %p145
        $region22: #{tpu_custom_call.1} parent=11 // pred_check_branch
          %196 = sbr.rel (%p194) target = $region24
        $region23: #{tpu_custom_call.1} parent=11 // pred_region
          _
        $region24: #{tpu_custom_call.1} parent=11 // pred_fallthru
          _
      $region12: #{tpu_custom_call.1} parent=5 // pred_fallthru
        _
      %p197 = scmp.lt.s32.totalorder %s14, 2
      // Predicated region
      $region25: #{tpu_custom_call.1} parent=5 // pred_check
        %p198 = pneg %p197
      $region26: #{tpu_custom_call.1} parent=5 // pred_check_branch
        %200 = sbr.rel (%p198) target = $region28
      $region27: #{tpu_custom_call.1} parent=5 // pred_region
        // Predicated region
        $region29: #{tpu_custom_call.1} parent=27 // pred_check
          %p201 = pneg %p48
        $region30: #{tpu_custom_call.1} parent=27 // pred_check_branch
          %203 = sbr.rel (%p201) target = $region32
        $region31: #{tpu_custom_call.1} parent=27 // pred_region
          %s204 = smul.u32 2, %s22
          %p205 = scmp.lt.s32.totalorder %s21, 1
          %s206 = scalar_select %p205, %s21, 1
          %p207 = scmp.lt.s32.totalorder %s204, 1
          %s208 = scalar_select %p207, %s204, 1
          %s209 = smul.addr %s206, 2
          %s210 = sadd.s32 %s208, %s209
          %s211 = smul.addr %s210, 4
          %s212 = scalar_lea.vmem %s0, %s211
          %s213 = smul.u32 2, %s22
        $region32: #{tpu_custom_call.1} parent=27 // pred_fallthru
          _
        // Predicated region
        $region33: #{tpu_custom_call.1} parent=27 // pred_check
          %p214 = pneg %p76
        $region34: #{tpu_custom_call.1} parent=27 // pred_check_branch
          %216 = sbr.rel (%p214) target = $region36
        $region35: #{tpu_custom_call.1} parent=27 // pred_region
          %s217 = smul.u32 2, %s22
          %p218 = scmp.lt.s32.totalorder %s21, 1
          %s219 = scalar_select %p218, %s21, 1
          %p220 = scmp.lt.s32.totalorder %s217, 1
          %s221 = scalar_select %p220, %s217, 1
          %s222 = smul.addr %s219, 2
          %s223 = sadd.s32 %s221, %s222
          %s224 = smul.addr %s223, 4
          %s225 = scalar_lea.vmem %s1, %s224
          %s226 = smul.u32 2, %s22
        $region36: #{tpu_custom_call.1} parent=27 // pred_fallthru
          _
      $region28: #{tpu_custom_call.1} parent=5 // pred_fallthru
        _
      %p227 = scmp.le.s32.totalorder 1, %s14
      %p228 = scmp.lt.s32.totalorder %s14, 3
      %p229 = pnand %p227, %p228
      %p230 = pneg %p229
      // Predicated region
      $region37: #{tpu_custom_call.1} parent=5 // pred_check
        _
      $region38: #{tpu_custom_call.1} parent=5 // pred_check_branch
        %232 = sbr.rel (%p229) target = $region40
      $region39: #{tpu_custom_call.1} parent=5 // pred_region
        %s233 = ssub.s32 %s14, 1
        %s234 = smul.u32 2, %s24
        %p235 = scmp.lt.s32.totalorder %s23, 1
        %s236 = scalar_select %p235, %s23, 1
        %p237 = scmp.lt.s32.totalorder %s234, 1
        %s238 = scalar_select %p237, %s234, 1
        %s239 = smul.addr %s236, 2
        %s240 = sadd.s32 %s238, %s239
        %s241 = smul.addr %s240, 4
        %s242 = scalar_lea.vmem %s0, %s241
        %p243 = pneg %p54
        %p244 = pneg %p51
        %s245 = smul.u32 2, %s24
        %p246 = scmp.lt.s32.totalorder %s23, 1
        %s247 = scalar_select %p246, %s23, 1
        %p248 = scmp.lt.s32.totalorder %s245, 1
        %s249 = scalar_select %p248, %s245, 1
        %s250 = smul.addr %s247, 2
        %s251 = sadd.s32 %s249, %s250
        %s252 = smul.addr %s251, 4
        %s253 = scalar_lea.vmem %s1, %s252
        %p254 = pneg %p82
        %p255 = pneg %p79
        %p256 = pneg %p103
        %p257 = pneg %p100
        %p258 = pneg %p124
        %p259 = pneg %p121
        %p260 = pneg %p145
        %p261 = pneg %p142
        %p262 = pneg %p173
        %p263 = pneg %p170
        %s264 = sand.u32 %s160, 1
        %s265 = scalar_lea.sflag [#allocation3], %s264
        %s266 = sand.u32 %s160, 1
        %s267 = smul.addr %s266, 8
        %s268 = scalar_lea.vmem [#allocation2], %s267
        %s269 = smul.u32 2, %s24
        %p270 = scmp.lt.s32.totalorder %s23, 1
        %s271 = scalar_select %p270, %s23, 1
        %p272 = scmp.lt.s32.totalorder %s269, 1
        %s273 = scalar_select %p272, %s269, 1
        %s274 = smul.addr %s271, 2
        %s275 = sadd.s32 %s273, %s274
        %s276 = smul.addr %s275, 4
        %s277 = scalar_lea.vmem %s0, %s276
        %s278 = smul.u32 2, %s24
        %s279 = smul.u32 2, %s24
        %p280 = scmp.lt.s32.totalorder %s23, 1
        %s281 = scalar_select %p280, %s23, 1
        %p282 = scmp.lt.s32.totalorder %s279, 1
        %s283 = scalar_select %p282, %s279, 1
        %s284 = smul.addr %s281, 2
        %s285 = sadd.s32 %s283, %s284
        %s286 = smul.addr %s285, 4
        %s287 = scalar_lea.vmem %s1, %s286
        %s288 = smul.u32 2, %s24
        %s289 = smul.u32 2, %s24
        %v290 = vld [vmem:[%s277] sm:$0xff]
        %v291 = vld [vmem:[%s287] sm:$0xff]
        %v292 = vld [vmem:[%s4] sm:$0xff]
        %v293 = vld [vmem:[%s2] sm:$0xff]
        %v294 = vld [vmem:[%s3] sm:$0xff]
        %296 = vset.pattern.permute.xlu0 0
        %297 = vperm.xlu0 %296, %v293
        %v298 = vpop.permute.xlu0 %297
        %v301 = vlaneseq
        %v302 = vshrl.u32 %v301, 7
        %v303 = vsub.s32 0, %v302
        %v304 = vrot.slane %v290, %v303
        %v305 = vlaneseq
        %v306 = vshrl.u32 %v305, 7
        %v307 = vsub.s32 4, %v306
        %v308 = vrot.slane %v290, %v307
        %v311 = vlaneseq
        %v312 = vshrl.u32 %v311, 7
        %v313 = vsub.s32 0, %v312
        %v314 = vrot.slane %v304, %v313
        %v315 = vlaneseq
        %v316 = vshrl.u32 %v315, 7
        %v317 = vsub.s32 0, %v316
        %v318 = vrot.slane %v308, %v317
        %v319 = vmul.f32 %v298, %v314
        %v320 = vmul.f32 %v298, %v318
        %322 = vset.pattern.permute.xlu0 0
        %323 = vperm.xlu0 %322, %v292
        %v324 = vpop.permute.xlu0 %323
        %v326 = vadd.f32 %v324, %v319
        %v327 = vadd.f32 %v324, %v320
        %328 = vset.pattern.permute.xlu0 1
        %329 = vperm.xlu0 %328, %v293
        %v330 = vpop.permute.xlu0 %329
        %v332 = vlaneseq
        %v333 = vshrl.u32 %v332, 7
        %v334 = vsub.s32 1, %v333
        %v335 = vrot.slane %v290, %v334
        %v336 = vlaneseq
        %v337 = vshrl.u32 %v336, 7
        %v338 = vsub.s32 5, %v337
        %v339 = vrot.slane %v290, %v338
        %v342 = vlaneseq
        %v343 = vshrl.u32 %v342, 7
        %v344 = vsub.s32 1, %v343
        %v345 = vrot.slane %v335, %v344
        %v346 = vlaneseq
        %v347 = vshrl.u32 %v346, 7
        %v348 = vsub.s32 1, %v347
        %v349 = vrot.slane %v339, %v348
        %v350 = vmul.f32 %v330, %v345
        %v351 = vmul.f32 %v330, %v349
        %v352 = vadd.f32 %v326, %v350
        %v353 = vadd.f32 %v327, %v351
        %354 = vset.pattern.permute.xlu0 2
        %355 = vperm.xlu0 %354, %v293
        %v356 = vpop.permute.xlu0 %355
        %v358 = vlaneseq
        %v359 = vshrl.u32 %v358, 7
        %v360 = vsub.s32 2, %v359
        %v361 = vrot.slane %v290, %v360
        %v362 = vlaneseq
        %v363 = vshrl.u32 %v362, 7
        %v364 = vsub.s32 6, %v363
        %v365 = vrot.slane %v290, %v364
        %v368 = vlaneseq
        %v369 = vshrl.u32 %v368, 7
        %v370 = vsub.s32 2, %v369
        %v371 = vrot.slane %v361, %v370
        %v372 = vlaneseq
        %v373 = vshrl.u32 %v372, 7
        %v374 = vsub.s32 2, %v373
        %v375 = vrot.slane %v365, %v374
        %v376 = vmul.f32 %v356, %v371
        %v377 = vmul.f32 %v356, %v375
        %v378 = vadd.f32 %v352, %v376
        %v379 = vadd.f32 %v353, %v377
        %380 = vset.pattern.permute.xlu0 3
        %381 = vperm.xlu0 %380, %v293
        %v382 = vpop.permute.xlu0 %381
        %v384 = vlaneseq
        %v385 = vshrl.u32 %v384, 7
        %v386 = vsub.s32 3, %v385
        %v387 = vrot.slane %v290, %v386
        %v388 = vlaneseq
        %v389 = vshrl.u32 %v388, 7
        %v390 = vsub.s32 7, %v389
        %v391 = vrot.slane %v290, %v390
        %v394 = vlaneseq
        %v395 = vshrl.u32 %v394, 7
        %v396 = vsub.s32 3, %v395
        %v397 = vrot.slane %v387, %v396
        %v398 = vlaneseq
        %v399 = vshrl.u32 %v398, 7
        %v400 = vsub.s32 3, %v399
        %v401 = vrot.slane %v391, %v400
        %v402 = vmul.f32 %v382, %v397
        %v403 = vmul.f32 %v382, %v401
        %v404 = vadd.f32 %v378, %v402
        %v405 = vadd.f32 %v379, %v403
        %407 = vset.pattern.permute.xlu0 0
        %408 = vperm.xlu0 %407, %v294
        %v409 = vpop.permute.xlu0 %408
        %v412 = vlaneseq
        %v413 = vshrl.u32 %v412, 7
        %v414 = vsub.s32 0, %v413
        %v415 = vrot.slane %v291, %v414
        %v416 = vlaneseq
        %v417 = vshrl.u32 %v416, 7
        %v418 = vsub.s32 4, %v417
        %v419 = vrot.slane %v291, %v418
        %v422 = vlaneseq
        %v423 = vshrl.u32 %v422, 7
        %v424 = vsub.s32 0, %v423
        %v425 = vrot.slane %v415, %v424
        %v426 = vlaneseq
        %v427 = vshrl.u32 %v426, 7
        %v428 = vsub.s32 0, %v427
        %v429 = vrot.slane %v419, %v428
        %v430 = vmul.f32 %v409, %v425
        %v431 = vmul.f32 %v409, %v429
        %v432 = vadd.f32 %v404, %v430
        %v433 = vadd.f32 %v405, %v431
        %434 = vset.pattern.permute.xlu0 1
        %435 = vperm.xlu0 %434, %v294
        %v436 = vpop.permute.xlu0 %435
        %v438 = vlaneseq
        %v439 = vshrl.u32 %v438, 7
        %v440 = vsub.s32 1, %v439
        %v441 = vrot.slane %v291, %v440
        %v442 = vlaneseq
        %v443 = vshrl.u32 %v442, 7
        %v444 = vsub.s32 5, %v443
        %v445 = vrot.slane %v291, %v444
        %v448 = vlaneseq
        %v449 = vshrl.u32 %v448, 7
        %v450 = vsub.s32 1, %v449
        %v451 = vrot.slane %v441, %v450
        %v452 = vlaneseq
        %v453 = vshrl.u32 %v452, 7
        %v454 = vsub.s32 1, %v453
        %v455 = vrot.slane %v445, %v454
        %v456 = vmul.f32 %v436, %v451
        %v457 = vmul.f32 %v436, %v455
        %v458 = vadd.f32 %v432, %v456
        %v459 = vadd.f32 %v433, %v457
        %460 = vset.pattern.permute.xlu0 2
        %461 = vperm.xlu0 %460, %v294
        %v462 = vpop.permute.xlu0 %461
        %v464 = vlaneseq
        %v465 = vshrl.u32 %v464, 7
        %v466 = vsub.s32 2, %v465
        %v467 = vrot.slane %v291, %v466
        %v468 = vlaneseq
        %v469 = vshrl.u32 %v468, 7
        %v470 = vsub.s32 6, %v469
        %v471 = vrot.slane %v291, %v470
        %v474 = vlaneseq
        %v475 = vshrl.u32 %v474, 7
        %v476 = vsub.s32 2, %v475
        %v477 = vrot.slane %v467, %v476
        %v478 = vlaneseq
        %v479 = vshrl.u32 %v478, 7
        %v480 = vsub.s32 2, %v479
        %v481 = vrot.slane %v471, %v480
        %v482 = vmul.f32 %v462, %v477
        %v483 = vmul.f32 %v462, %v481
        %v484 = vadd.f32 %v458, %v482
        %v485 = vadd.f32 %v459, %v483
        %486 = vset.pattern.permute.xlu0 3
        %487 = vperm.xlu0 %486, %v294
        %v488 = vpop.permute.xlu0 %487
        %v490 = vlaneseq
        %v491 = vshrl.u32 %v490, 7
        %v492 = vsub.s32 3, %v491
        %v493 = vrot.slane %v291, %v492
        %v494 = vlaneseq
        %v495 = vshrl.u32 %v494, 7
        %v496 = vsub.s32 7, %v495
        %v497 = vrot.slane %v291, %v496
        %v500 = vlaneseq
        %v501 = vshrl.u32 %v500, 7
        %v502 = vsub.s32 3, %v501
        %v503 = vrot.slane %v493, %v502
        %v504 = vlaneseq
        %v505 = vshrl.u32 %v504, 7
        %v506 = vsub.s32 3, %v505
        %v507 = vrot.slane %v497, %v506
        %v508 = vmul.f32 %v488, %v503
        %v509 = vmul.f32 %v488, %v507
        %v510 = vadd.f32 %v484, %v508
        %v511 = vadd.f32 %v485, %v509
        %v512 = vmax.f32 %v510, 0.0
        %v513 = vmax.f32 %v511, 0.0
        %514 = vset.pattern.permute.xlu0 1
        %515 = vperm.xlu0 %514, %v292
        %v516 = vpop.permute.xlu0 %515
        %v518 = vmul.f32 %v512, %v516
        %v519 = vmul.f32 %v513, %v516
        %v520 = vrot.slane %v518, 4
        %v521 = vadd.f32 %v518, %v520
        %v522 = vrot.slane %v521, 2
        %v523 = vadd.f32 %v521, %v522
        %v524 = vrot.slane %v523, 1
        %v525 = vadd.f32 %v523, %v524
        %v526 = vrot.slane %v519, 4
        %v527 = vadd.f32 %v519, %v526
        %v528 = vrot.slane %v527, 2
        %v529 = vadd.f32 %v527, %v528
        %v530 = vrot.slane %v529, 1
        %v531 = vadd.f32 %v529, %v530
        %532 = vset.pattern.permute.xlu0 2
        %533 = vperm.xlu0 %532, %v292
        %v534 = vpop.permute.xlu0 %533
        %v536 = vadd.f32 %v525, %v534
        %v537 = vadd.f32 %v531, %v534
        %v538 = vxor.u32 %v536, 2147483648
        %v539 = vxor.u32 %v537, 2147483648
        %v540 = vmul.f32 %v538, 1.442695
        %v541 = vpow.pop %v540
        %v542 = vmul.f32 %v539, 1.442695
        %v543 = vpow.pop %v542
        %v544 = vadd.f32 %v541, 1.0
        %v545 = vadd.f32 %v543, 1.0
        %v546 = vrcp.pop %v544
        %v547 = vmul.f32 1.0, %v546
        %v548 = vrcp.pop %v545
        %v549 = vmul.f32 1.0, %v548
        %v550 = vlaneseq
        %v551 = vshrl.u32 %v550, 7
        %v552 = vsub.s32 0, %v551
        %v553 = vrot.slane %v547, %v552
        %v554 = vlaneseq
        %v555 = vshrl.u32 %v554, 7
        %v556 = vsub.s32 0, %v555
        %v557 = vrot.slane %v549, %v556
        %v560 = vcombine.low %v553, %v557
        %v562 = vmul.f32 %v291, %v560
        %563 = vst [vmem:[%s268] sm:$0xff] %v562
        %s564 = sand.u32 %s160, 1
        %s565 = scalar_lea.sflag [#allocation3], %s564
        %s566 = sand.u32 %s160, 1
        %s567 = smul.addr %s566, 8
        %s568 = scalar_lea.vmem [#allocation2], %s567
        // Predicated region
        $region41: #{tpu_custom_call.1} parent=39 // pred_check
          %p569 = pneg %p170
        $region42: #{tpu_custom_call.1} parent=39 // pred_check_branch
          %571 = sbr.rel (%p569) target = $region44
        $region43: #{tpu_custom_call.1} parent=39 // pred_region
          %s572 = smul.u32 2, %s24
          %s574 = ssub.s32 128, 128
          %575 = vsyncadd %s565, %s574
          %s576 = smul.addr %s23, 2
          %s577 = sadd.s32 %s572, %s576
          %s578 = smul.addr %s577, 64
          %s579 = scalar_lea.hbm %s5, %s578
          %s581 = sshll.u32 %s568, 4
          %s582 = int_to_ptr.vmem [resolvable:$true] %s581
          %584 = dma.vmem_to_hbm [thread:$0]  %s582, 128, %s579, %s565
        $region44: #{tpu_custom_call.1} parent=39 // pred_fallthru
          _
      $region40: #{tpu_custom_call.1} parent=5 // pred_fallthru
        _
      %p585 = scmp.le.s32.totalorder 2, %s14
      // Predicated region
      $region45: #{tpu_custom_call.1} parent=5 // pred_check
        %p586 = pneg %p585
      $region46: #{tpu_custom_call.1} parent=5 // pred_check_branch
        %588 = sbr.rel (%p586) target = $region48
      $region47: #{tpu_custom_call.1} parent=5 // pred_region
        %s589 = ssub.s32 %s14, 2
        // Predicated region
        $region49: #{tpu_custom_call.1} parent=47 // pred_check
          %p590 = pneg %p176
        $region50: #{tpu_custom_call.1} parent=47 // pred_check_branch
          %592 = sbr.rel (%p590) target = $region52
        $region51: #{tpu_custom_call.1} parent=47 // pred_region
          %s593 = sand.u32 %s161, 1
          %s594 = scalar_lea.sflag [#allocation3], %s593
          %s595 = sand.u32 %s161, 1
          %s596 = smul.addr %s595, 8
          %s597 = scalar_lea.vmem [#allocation2], %s596
          %598 = dma.done %s594, 128
        $region52: #{tpu_custom_call.1} parent=47 // pred_fallthru
          _
      $region48: #{tpu_custom_call.1} parent=5 // pred_fallthru
        _
    $region6: #{tpu_custom_call.1} parent=1 // loop_footer
      %s18 = sadd.s32 1, %s14
    $region7: #{tpu_custom_call.1} parent=1 // loop_footer_branch
      %13 = sbr.rel target = $region3
    $region8: #{tpu_custom_call.1} parent=1 // loop_exit
      _
    %599 = vsyncpa [#allocation3], 1
    %s600 = scalar_lea.sflag [#allocation3], 1
    %601 = vsyncpa %s600, 1

</llo_original>
